<compile_context>
chip_gen: v5e
topology: v5e:2x2
jax: 0.10.0
libtpu: 0.0.40
codegen_flags: <defaults>
</compile_context>

<pallas_src>
import jax
import jax.numpy as jnp
from jax.experimental import pallas as pl
from jax.experimental.pallas import tpu as pltpu

LEAKY_SLOPE = 0.01  # torch.nn.LeakyReLU default negative_slope


def _leaky_relu(x):
    return jnp.where(x > 0, x, LEAKY_SLOPE * x)


def _round_up(n, m):
    return ((n + m - 1) // m) * m


def _pad2(a, rows, cols, dtype):
    a = jnp.asarray(a, dtype)
    return jnp.pad(a, ((0, rows - a.shape[0]), (0, cols - a.shape[1])))


def _vmem_capacity_bytes():
    try:
        return int(pltpu.get_tpu_info().vmem_capacity_bytes)
    except Exception:
        return 64 * 1024 * 1024  # conservative fallback (v7x per-TC VMEM)


def seqmodel_head_kernel(x_ref, w1_ref, b1_ref, w2_ref, b2_ref, w3_ref, b3_ref,
                         o_ref):
    """One batch tile of the fused 3-layer head.

    bf16 MXU operands, f32 accumulation / bias / LeakyReLU on the VPU.  The
    bf16 casts are fused into the activation expressions so no f32 and bf16
    copies of the same intermediate are live at once.  Weights & biases are
    VMEM-resident (constant block index, single-buffered); only the x / out
    tiles stream and are double-buffered.
    """
    x = x_ref[...].astype(jnp.bfloat16)                              # in-kernel cast
    h1 = _leaky_relu(
        jnp.dot(x, w1_ref[...], preferred_element_type=jnp.float32) + b1_ref[...]
    ).astype(jnp.bfloat16)                                           # [TB, Ip]
    h2 = _leaky_relu(
        jnp.dot(h1, w2_ref[...], preferred_element_type=jnp.float32) + b2_ref[...]
    ).astype(jnp.bfloat16)                                           # [TB, H2p]
    out = jnp.dot(h2, w3_ref[...], preferred_element_type=jnp.float32) + b3_ref[...]
    o_ref[...] = out.astype(o_ref.dtype)                             # bf16 [TB, NCp]


def prepare_params(w1, b1, w2, b2, w3, b3):
    """Pad + cast the head parameters ONCE (outside the per-call path).

    Weights -> bf16, zero-padded to lane-dense multiples of 128.
    Biases  -> f32,  zero-padded (elementwise math stays f32).
    Zero padding keeps the math exact: padded inputs contribute 0, padded bias
    is 0, and LeakyReLU(0) = 0; the padded logit columns are sliced off.
    """
    H, I = w1.shape
    H2 = w2.shape[1]
    NC = w3.shape[1]
    Hp, Ip, H2p, NCp = (_round_up(d, 128) for d in (H, I, H2, NC))
    return {
        "w1": _pad2(w1, Hp, Ip, jnp.bfloat16),
        "b1": _pad2(b1, 1, Ip, jnp.float32),
        "w2": _pad2(w2, Ip, H2p, jnp.bfloat16),
        "b2": _pad2(b2, 1, H2p, jnp.float32),
        "w3": _pad2(w3, H2p, NCp, jnp.bfloat16),
        "b3": _pad2(b3, 1, NCp, jnp.float32),
        "dims": (H, I, H2, NC, Hp, Ip, H2p, NCp),
    }


def seqmodel_head(x, params, *, batch_tile=512):
    """x: [B, hidden] f32 CLS embeddings; params from prepare_params()."""
    H, I, H2, NC, Hp, Ip, H2p, NCp = params["dims"]
    B = x.shape[0]
    assert x.shape[1] == H, (x.shape, H)

    # Batch tile: multiple of 16 sublanes (bf16-output friendly), capped at
    # batch_tile, and chosen so moderately large batches split into >=2 grid
    # tiles (so v7x's two TensorCores both get work on the "parallel" axis).
    TB = max(16, min(_round_up(batch_tile, 16), _round_up((B + 1) // 2, 16)))
    Bp = _round_up(B, TB)

    # Only pad activations when needed (production hidden sizes are already
    # multiples of 128, so this is usually a no-op).  x stays f32 in HBM; the
    # bf16 cast happens inside the kernel.
    x = x.astype(jnp.float32)
    if (Bp, Hp) != (B, H):
        x = jnp.pad(x, ((0, Bp - B), (0, Hp - H)))

    grid = (Bp // TB,)

    flops = 2 * Bp * (Hp * Ip + Ip * H2p + H2p * NCp)
    bytes_accessed = (
        Bp * Hp * 4                                    # x (f32)
        + 2 * (Hp * Ip + Ip * H2p + H2p * NCp)         # bf16 weights
        + 4 * (Ip + H2p + NCp)                         # f32 biases
        + Bp * NCp * 2)                                # bf16 out

    # VMEM plan: double-buffered streamed x/out tiles, SINGLE-buffered
    # resident bf16 weights, f32 biases, plus intermediate scratch.
    vmem_need = (
        2 * TB * Hp * 4                                # x tiles (f32, 2 bufs)
        + 2 * TB * NCp * 2                             # out tiles (bf16, 2 bufs)
        + 2 * (Hp * Ip + Ip * H2p + H2p * NCp)         # weights (bf16, 1 buf)
        + 4 * (Ip + H2p + NCp)                         # biases (f32)
        + 4 * TB * max(Ip, H2p)                        # f32 pre-activation
        + 2 * TB * (Hp + Ip + H2p))                    # bf16 matmul operands
    vmem_limit = int(min(max(2 * vmem_need, 16 * 1024 * 1024),
                         int(0.85 * _vmem_capacity_bytes())))

    const = lambda i: (0, 0)

    def _call(resident_mode):
        def rspec(shape):
            if resident_mode is None:
                return pl.BlockSpec(shape, const)
            return pl.BlockSpec(shape, const, pipeline_mode=resident_mode)

        return pl.pallas_call(
            seqmodel_head_kernel,
            out_shape=jax.ShapeDtypeStruct((Bp, NCp), jnp.bfloat16),
            grid=grid,
            in_specs=[
                pl.BlockSpec((TB, Hp), lambda i: (i, 0)),   # x: streams over batch
                rspec((Hp, Ip)),                            # w1: resident
                rspec((1, Ip)),                             # b1
                rspec((Ip, H2p)),                           # w2
                rspec((1, H2p)),                            # b2
                rspec((H2p, NCp)),                          # w3
                rspec((1, NCp)),                            # b3
            ],
            out_specs=pl.BlockSpec((TB, NCp), lambda i: (i, 0)),
            compiler_params=pltpu.CompilerParams(
                dimension_semantics=("parallel",),
                vmem_limit_bytes=vmem_limit),
            cost_estimate=pl.CostEstimate(
                flops=flops, transcendentals=0, bytes_accessed=bytes_accessed),
        )(x, params["w1"], params["b1"], params["w2"], params["b2"],
          params["w3"], params["b3"])

    try:
        out_padded = _call(pl.Buffered(1))     # single-buffer resident weights
    except Exception:
        # Fallback: default double-buffering (still correct; only costs VMEM).
        out_padded = _call(None)

    return out_padded[:B, :NC]


def make_params(key, hidden, interm):
    """Deterministic synthetic parameters (torch.nn.Linear shapes, transposed
    to [in, out] layout)."""
    k = jax.random.split(key, 6)
    half = interm >> 1
    scale = 0.05
    w1 = scale * jax.random.normal(k[0], (hidden, interm), jnp.float32)
    b1 = scale * jax.random.normal(k[1], (1, interm), jnp.float32)
    w2 = scale * jax.random.normal(k[2], (interm, half), jnp.float32)
    b2 = scale * jax.random.normal(k[3], (1, half), jnp.float32)
    w3 = scale * jax.random.normal(k[4], (half, 2), jnp.float32)
    b3 = scale * jax.random.normal(k[5], (1, 2), jnp.float32)
    return w1, b1, w2, b2, w3, b3


def reference(x, w1, b1, w2, b2, w3, b3):
    h1 = _leaky_relu(x @ w1 + b1)
    h2 = _leaky_relu(h1 @ w2 + b2)
    return h2 @ w3 + b3


if __name__ == "__main__":
    # TODO(synk): the HuggingFace transformer encoder + tokenizer are not
    # reimplemented; the kernel consumes the pooled CLS embedding
    # X = transformer(...)[0][:, 0].
    B, HIDDEN, INTERM = 8, 32, 32          # small synthetic sizes
    key = jax.random.PRNGKey(0)
    kx, kp = jax.random.split(key)
    x = jax.random.normal(kx, (B, HIDDEN), jnp.float32)   # CLS embeddings
    raw_params = make_params(kp, HIDDEN, INTERM)

    packed = prepare_params(*raw_params)   # one-time pack (padded bf16 weights)
    packed = jax.tree_util.tree_map(jax.block_until_ready,
                                    {k: v for k, v in packed.items() if k != "dims"}
                                    ) | {"dims": packed["dims"]}

    out = seqmodel_head(x, packed)
    out = jax.block_until_ready(out)

    ref = reference(x, *raw_params)
    assert out.shape == (B, 2), out.shape
    # bf16 matmul operands / intermediates / output (f32 accumulation) ->
    # loosened tolerance vs the f32 reference.
    assert jnp.allclose(out.astype(jnp.float32), ref, atol=3e-2, rtol=3e-2), \
        "mismatch vs reference"
    print("KERNEL_OK")
</pallas_src>

<mosaic_0001>
module attributes {stable_mosaic.version = 11 : i64} {
  func.func @seqmodel_head_kernel(%arg0: i32, %arg1: memref<16x128xf32, #tpu.memory_space<vmem>>, %arg2: memref<128x128xbf16, #tpu.memory_space<vmem>>, %arg3: memref<1x128xf32, #tpu.memory_space<vmem>>, %arg4: memref<128x128xbf16, #tpu.memory_space<vmem>>, %arg5: memref<1x128xf32, #tpu.memory_space<vmem>>, %arg6: memref<128x128xbf16, #tpu.memory_space<vmem>>, %arg7: memref<1x128xf32, #tpu.memory_space<vmem>>, %arg8: memref<16x128xbf16, #tpu.memory_space<vmem>>) attributes {dimension_semantics = [#tpu.dimension_semantics<parallel>], iteration_bounds = array<i64: 1>, scalar_prefetch = 0 : i64, scratch_operands = 0 : i64, tpu.core_type = #tpu.core_type<tc>, window_params = [{transform_indices = @transform_0, window_bounds = array<i64: 16, 128>}, {pipeline_mode = #tpu.pipeline_mode<synchronous>, transform_indices = @transform_1, window_bounds = array<i64: 128, 128>}, {pipeline_mode = #tpu.pipeline_mode<synchronous>, transform_indices = @transform_2, window_bounds = array<i64: 1, 128>}, {pipeline_mode = #tpu.pipeline_mode<synchronous>, transform_indices = @transform_3, window_bounds = array<i64: 128, 128>}, {pipeline_mode = #tpu.pipeline_mode<synchronous>, transform_indices = @transform_4, window_bounds = array<i64: 1, 128>}, {pipeline_mode = #tpu.pipeline_mode<synchronous>, transform_indices = @transform_5, window_bounds = array<i64: 128, 128>}, {pipeline_mode = #tpu.pipeline_mode<synchronous>, transform_indices = @transform_6, window_bounds = array<i64: 1, 128>}, {transform_indices = @transform_7, window_bounds = array<i64: 16, 128>}]} {
    %c0 = arith.constant 0 : index
    %c0_0 = arith.constant 0 : index
    %0 = vector.load %arg1[%c0, %c0_0] : memref<16x128xf32, #tpu.memory_space<vmem>>, vector<16x128xf32>
    %1 = arith.truncf %0 : vector<16x128xf32> to vector<16x128xbf16>
    %c0_1 = arith.constant 0 : index
    %c0_2 = arith.constant 0 : index
    %2 = vector.load %arg2[%c0_1, %c0_2] : memref<128x128xbf16, #tpu.memory_space<vmem>>, vector<128x128xbf16>
    %cst = arith.constant dense<0.000000e+00> : vector<16x128xf32>
    %3 = tpu.matmul %1, %2, %cst {dimension_numbers = #tpu.dot_dimension_numbers<[1], [0], [0], [1], [0, 0, 1, 1], [], []>} : vector<16x128xbf16>, vector<128x128xbf16>, vector<16x128xf32> -> vector<16x128xf32>
    %c0_3 = arith.constant 0 : index
    %c0_4 = arith.constant 0 : index
    %4 = vector.load %arg3[%c0_3, %c0_4] : memref<1x128xf32, #tpu.memory_space<vmem>>, vector<1x128xf32>
    %5 = vector.broadcast %4 : vector<1x128xf32> to vector<16x128xf32>
    %6 = arith.addf %3, %5 : vector<16x128xf32>
    %cst_5 = arith.constant 0.000000e+00 : f32
    %7 = vector.broadcast %cst_5 : f32 to vector<16x128xf32>
    %8 = arith.cmpf ogt, %6, %7 : vector<16x128xf32>
    %cst_6 = arith.constant 0.00999999977 : f32
    %9 = vector.broadcast %cst_6 : f32 to vector<16x128xf32>
    %10 = arith.mulf %9, %6 : vector<16x128xf32>
    %11 = arith.select %8, %6, %10 : vector<16x128xi1>, vector<16x128xf32>
    %12 = arith.truncf %11 : vector<16x128xf32> to vector<16x128xbf16>
    %c0_7 = arith.constant 0 : index
    %c0_8 = arith.constant 0 : index
    %13 = vector.load %arg4[%c0_7, %c0_8] : memref<128x128xbf16, #tpu.memory_space<vmem>>, vector<128x128xbf16>
    %cst_9 = arith.constant dense<0.000000e+00> : vector<16x128xf32>
    %14 = tpu.matmul %12, %13, %cst_9 {dimension_numbers = #tpu.dot_dimension_numbers<[1], [0], [0], [1], [0, 0, 1, 1], [], []>} : vector<16x128xbf16>, vector<128x128xbf16>, vector<16x128xf32> -> vector<16x128xf32>
    %c0_10 = arith.constant 0 : index
    %c0_11 = arith.constant 0 : index
    %15 = vector.load %arg5[%c0_10, %c0_11] : memref<1x128xf32, #tpu.memory_space<vmem>>, vector<1x128xf32>
    %16 = vector.broadcast %15 : vector<1x128xf32> to vector<16x128xf32>
    %17 = arith.addf %14, %16 : vector<16x128xf32>
    %cst_12 = arith.constant 0.000000e+00 : f32
    %18 = vector.broadcast %cst_12 : f32 to vector<16x128xf32>
    %19 = arith.cmpf ogt, %17, %18 : vector<16x128xf32>
    %cst_13 = arith.constant 0.00999999977 : f32
    %20 = vector.broadcast %cst_13 : f32 to vector<16x128xf32>
    %21 = arith.mulf %20, %17 : vector<16x128xf32>
    %22 = arith.select %19, %17, %21 : vector<16x128xi1>, vector<16x128xf32>
    %23 = arith.truncf %22 : vector<16x128xf32> to vector<16x128xbf16>
    %c0_14 = arith.constant 0 : index
    %c0_15 = arith.constant 0 : index
    %24 = vector.load %arg6[%c0_14, %c0_15] : memref<128x128xbf16, #tpu.memory_space<vmem>>, vector<128x128xbf16>
    %cst_16 = arith.constant dense<0.000000e+00> : vector<16x128xf32>
    %25 = tpu.matmul %23, %24, %cst_16 {dimension_numbers = #tpu.dot_dimension_numbers<[1], [0], [0], [1], [0, 0, 1, 1], [], []>} : vector<16x128xbf16>, vector<128x128xbf16>, vector<16x128xf32> -> vector<16x128xf32>
    %c0_17 = arith.constant 0 : index
    %c0_18 = arith.constant 0 : index
    %26 = vector.load %arg7[%c0_17, %c0_18] : memref<1x128xf32, #tpu.memory_space<vmem>>, vector<1x128xf32>
    %27 = vector.broadcast %26 : vector<1x128xf32> to vector<16x128xf32>
    %28 = arith.addf %25, %27 : vector<16x128xf32>
    %29 = arith.truncf %28 : vector<16x128xf32> to vector<16x128xbf16>
    %c0_19 = arith.constant 0 : index
    %c0_20 = arith.constant 0 : index
    %30 = vector.load %arg8[%c0_19, %c0_20] : memref<16x128xbf16, #tpu.memory_space<vmem>>, vector<16x128xbf16>
    tpu.vector_store %arg8[%c0_19, %c0_20], %29 {strides = array<i32>} : memref<16x128xbf16, #tpu.memory_space<vmem>>, vector<16x128xbf16>,
    return
  }
  func.func @transform_0(%arg0: i32) -> (i32, i32) {
    %c0_i32 = arith.constant 0 : i32
    %c0_i32_0 = arith.constant 0 : i32
    return %arg0, %c0_i32 : i32, i32
  }
  func.func @transform_1(%arg0: i32) -> (i32, i32) {
    %c0_i32 = arith.constant 0 : i32
    %c0_i32_0 = arith.constant 0 : i32
    %c0_i32_1 = arith.constant 0 : i32
    return %c0_i32, %c0_i32_0 : i32, i32
  }
  func.func @transform_2(%arg0: i32) -> (i32, i32) {
    %c0_i32 = arith.constant 0 : i32
    %c0_i32_0 = arith.constant 0 : i32
    %c0_i32_1 = arith.constant 0 : i32
    return %c0_i32, %c0_i32_0 : i32, i32
  }
  func.func @transform_3(%arg0: i32) -> (i32, i32) {
    %c0_i32 = arith.constant 0 : i32
    %c0_i32_0 = arith.constant 0 : i32
    %c0_i32_1 = arith.constant 0 : i32
    return %c0_i32, %c0_i32_0 : i32, i32
  }
  func.func @transform_4(%arg0: i32) -> (i32, i32) {
    %c0_i32 = arith.constant 0 : i32
    %c0_i32_0 = arith.constant 0 : i32
    %c0_i32_1 = arith.constant 0 : i32
    return %c0_i32, %c0_i32_0 : i32, i32
  }
  func.func @transform_5(%arg0: i32) -> (i32, i32) {
    %c0_i32 = arith.constant 0 : i32
    %c0_i32_0 = arith.constant 0 : i32
    %c0_i32_1 = arith.constant 0 : i32
    return %c0_i32, %c0_i32_0 : i32, i32
  }
  func.func @transform_6(%arg0: i32) -> (i32, i32) {
    %c0_i32 = arith.constant 0 : i32
    %c0_i32_0 = arith.constant 0 : i32
    %c0_i32_1 = arith.constant 0 : i32
    return %c0_i32, %c0_i32_0 : i32, i32
  }
  func.func @transform_7(%arg0: i32) -> (i32, i32) {
    %c0_i32 = arith.constant 0 : i32
    %c0_i32_0 = arith.constant 0 : i32
    return %arg0, %c0_i32 : i32, i32
  }
}

module attributes {stable_mosaic.version = 11 : i64} {
  func.func @seqmodel_head_kernel(%arg0: i32, %arg1: memref<16x128xf32, #tpu.memory_space<vmem>>, %arg2: memref<128x128xbf16, #tpu.memory_space<vmem>>, %arg3: memref<1x128xf32, #tpu.memory_space<vmem>>, %arg4: memref<128x128xbf16, #tpu.memory_space<vmem>>, %arg5: memref<1x128xf32, #tpu.memory_space<vmem>>, %arg6: memref<128x128xbf16, #tpu.memory_space<vmem>>, %arg7: memref<1x128xf32, #tpu.memory_space<vmem>>, %arg8: memref<16x128xbf16, #tpu.memory_space<vmem>>) attributes {dimension_semantics = [#tpu.dimension_semantics<parallel>], iteration_bounds = array<i64: 1>, scalar_prefetch = 0 : i64, scratch_operands = 0 : i64, tpu.core_type = #tpu.core_type<tc>, window_params = [{transform_indices = @transform_0, window_bounds = array<i64: 16, 128>}, {pipeline_mode = #tpu.pipeline_mode<synchronous>, transform_indices = @transform_1, window_bounds = array<i64: 128, 128>}, {pipeline_mode = #tpu.pipeline_mode<synchronous>, transform_indices = @transform_2, window_bounds = array<i64: 1, 128>}, {pipeline_mode = #tpu.pipeline_mode<synchronous>, transform_indices = @transform_3, window_bounds = array<i64: 128, 128>}, {pipeline_mode = #tpu.pipeline_mode<synchronous>, transform_indices = @transform_4, window_bounds = array<i64: 1, 128>}, {pipeline_mode = #tpu.pipeline_mode<synchronous>, transform_indices = @transform_5, window_bounds = array<i64: 128, 128>}, {pipeline_mode = #tpu.pipeline_mode<synchronous>, transform_indices = @transform_6, window_bounds = array<i64: 1, 128>}, {transform_indices = @transform_7, window_bounds = array<i64: 16, 128>}]} {
    %c0 = arith.constant 0 : index
    %c0_0 = arith.constant 0 : index
    %0 = vector.load %arg1[%c0, %c0_0] : memref<16x128xf32, #tpu.memory_space<vmem>>, vector<16x128xf32>
    %1 = arith.truncf %0 : vector<16x128xf32> to vector<16x128xbf16>
    %c0_1 = arith.constant 0 : index
    %c0_2 = arith.constant 0 : index
    %2 = vector.load %arg2[%c0_1, %c0_2] : memref<128x128xbf16, #tpu.memory_space<vmem>>, vector<128x128xbf16>
    %cst = arith.constant dense<0.000000e+00> : vector<16x128xf32>
    %3 = tpu.matmul %1, %2, %cst {dimension_numbers = #tpu.dot_dimension_numbers<[1], [0], [0], [1], [0, 0, 1, 1], [], []>} : vector<16x128xbf16>, vector<128x128xbf16>, vector<16x128xf32> -> vector<16x128xf32>
    %c0_3 = arith.constant 0 : index
    %c0_4 = arith.constant 0 : index
    %4 = vector.load %arg3[%c0_3, %c0_4] : memref<1x128xf32, #tpu.memory_space<vmem>>, vector<1x128xf32>
    %5 = vector.broadcast %4 : vector<1x128xf32> to vector<16x128xf32>
    %6 = arith.addf %3, %5 : vector<16x128xf32>
    %cst_5 = arith.constant 0.000000e+00 : f32
    %7 = vector.broadcast %cst_5 : f32 to vector<16x128xf32>
    %8 = arith.cmpf ogt, %6, %7 : vector<16x128xf32>
    %cst_6 = arith.constant 0.00999999977 : f32
    %9 = vector.broadcast %cst_6 : f32 to vector<16x128xf32>
    %10 = arith.mulf %9, %6 : vector<16x128xf32>
    %11 = arith.select %8, %6, %10 : vector<16x128xi1>, vector<16x128xf32>
    %12 = arith.truncf %11 : vector<16x128xf32> to vector<16x128xbf16>
    %c0_7 = arith.constant 0 : index
    %c0_8 = arith.constant 0 : index
    %13 = vector.load %arg4[%c0_7, %c0_8] : memref<128x128xbf16, #tpu.memory_space<vmem>>, vector<128x128xbf16>
    %cst_9 = arith.constant dense<0.000000e+00> : vector<16x128xf32>
    %14 = tpu.matmul %12, %13, %cst_9 {dimension_numbers = #tpu.dot_dimension_numbers<[1], [0], [0], [1], [0, 0, 1, 1], [], []>} : vector<16x128xbf16>, vector<128x128xbf16>, vector<16x128xf32> -> vector<16x128xf32>
    %c0_10 = arith.constant 0 : index
    %c0_11 = arith.constant 0 : index
    %15 = vector.load %arg5[%c0_10, %c0_11] : memref<1x128xf32, #tpu.memory_space<vmem>>, vector<1x128xf32>
    %16 = vector.broadcast %15 : vector<1x128xf32> to vector<16x128xf32>
    %17 = arith.addf %14, %16 : vector<16x128xf32>
    %cst_12 = arith.constant 0.000000e+00 : f32
    %18 = vector.broadcast %cst_12 : f32 to vector<16x128xf32>
    %19 = arith.cmpf ogt, %17, %18 : vector<16x128xf32>
    %cst_13 = arith.constant 0.00999999977 : f32
    %20 = vector.broadcast %cst_13 : f32 to vector<16x128xf32>
    %21 = arith.mulf %20, %17 : vector<16x128xf32>
    %22 = arith.select %19, %17, %21 : vector<16x128xi1>, vector<16x128xf32>
    %23 = arith.truncf %22 : vector<16x128xf32> to vector<16x128xbf16>
    %c0_14 = arith.constant 0 : index
    %c0_15 = arith.constant 0 : index
    %24 = vector.load %arg6[%c0_14, %c0_15] : memref<128x128xbf16, #tpu.memory_space<vmem>>, vector<128x128xbf16>
    %cst_16 = arith.constant dense<0.000000e+00> : vector<16x128xf32>
    %25 = tpu.matmul %23, %24, %cst_16 {dimension_numbers = #tpu.dot_dimension_numbers<[1], [0], [0], [1], [0, 0, 1, 1], [], []>} : vector<16x128xbf16>, vector<128x128xbf16>, vector<16x128xf32> -> vector<16x128xf32>
    %c0_17 = arith.constant 0 : index
    %c0_18 = arith.constant 0 : index
    %26 = vector.load %arg7[%c0_17, %c0_18] : memref<1x128xf32, #tpu.memory_space<vmem>>, vector<1x128xf32>
    %27 = vector.broadcast %26 : vector<1x128xf32> to vector<16x128xf32>
    %28 = arith.addf %25, %27 : vector<16x128xf32>
    %29 = arith.truncf %28 : vector<16x128xf32> to vector<16x128xbf16>
    %c0_19 = arith.constant 0 : index
    %c0_20 = arith.constant 0 : index
    %30 = vector.load %arg8[%c0_19, %c0_20] : memref<16x128xbf16, #tpu.memory_space<vmem>>, vector<16x128xbf16>
    tpu.vector_store %arg8[%c0_19, %c0_20], %29 {strides = array<i32>} : memref<16x128xbf16, #tpu.memory_space<vmem>>, vector<16x128xbf16>,
    return
  }
  func.func @transform_0(%arg0: i32) -> (i32, i32) {
    %c0_i32 = arith.constant 0 : i32
    %c0_i32_0 = arith.constant 0 : i32
    return %arg0, %c0_i32 : i32, i32
  }
  func.func @transform_1(%arg0: i32) -> (i32, i32) {
    %c0_i32 = arith.constant 0 : i32
    %c0_i32_0 = arith.constant 0 : i32
    %c0_i32_1 = arith.constant 0 : i32
    return %c0_i32, %c0_i32_0 : i32, i32
  }
  func.func @transform_2(%arg0: i32) -> (i32, i32) {
    %c0_i32 = arith.constant 0 : i32
    %c0_i32_0 = arith.constant 0 : i32
    %c0_i32_1 = arith.constant 0 : i32
    return %c0_i32, %c0_i32_0 : i32, i32
  }
  func.func @transform_3(%arg0: i32) -> (i32, i32) {
    %c0_i32 = arith.constant 0 : i32
    %c0_i32_0 = arith.constant 0 : i32
    %c0_i32_1 = arith.constant 0 : i32
    return %c0_i32, %c0_i32_0 : i32, i32
  }
  func.func @transform_4(%arg0: i32) -> (i32, i32) {
    %c0_i32 = arith.constant 0 : i32
    %c0_i32_0 = arith.constant 0 : i32
    %c0_i32_1 = arith.constant 0 : i32
    return %c0_i32, %c0_i32_0 : i32, i32
  }
  func.func @transform_5(%arg0: i32) -> (i32, i32) {
    %c0_i32 = arith.constant 0 : i32
    %c0_i32_0 = arith.constant 0 : i32
    %c0_i32_1 = arith.constant 0 : i32
    return %c0_i32, %c0_i32_0 : i32, i32
  }
  func.func @transform_6(%arg0: i32) -> (i32, i32) {
    %c0_i32 = arith.constant 0 : i32
    %c0_i32_0 = arith.constant 0 : i32
    %c0_i32_1 = arith.constant 0 : i32
    return %c0_i32, %c0_i32_0 : i32, i32
  }
  func.func @transform_7(%arg0: i32) -> (i32, i32) {
    %c0_i32 = arith.constant 0 : i32
    %c0_i32_0 = arith.constant 0 : i32
    return %arg0, %c0_i32 : i32, i32
  }
}

</mosaic_0001>

<llo_original>
// kernel: tpu_custom_call.1
$region0: #{tpu_custom_call.1}
  #allocation0 [shape = 'u32[]', space=smem, size = 0x4, offset = 0x4, fixed_abs, tag = 'smem constant byte address 0x4 - core index']
  #allocation1 [shape = 'u32[72,128]{1,0:T(1,128)}', space=vmem, size = 0x9000, scoped, tag = 'internal scratch']
  %s0 = inlined_call_operand.hbm [shape: f32[16,128], index: 0, kind: input, shape index: {}]
  %s1 = inlined_call_operand.hbm [shape: bf16[128,128], index: 1, kind: input, shape index: {}]
  %s2 = inlined_call_operand.vmem [shape: f32[1,128], index: 2, kind: input, shape index: {}]
  %s3 = inlined_call_operand.hbm [shape: bf16[128,128], index: 3, kind: input, shape index: {}]
  %s4 = inlined_call_operand.vmem [shape: f32[1,128], index: 4, kind: input, shape index: {}]
  %s5 = inlined_call_operand.hbm [shape: bf16[128,128], index: 5, kind: input, shape index: {}]
  %s6 = inlined_call_operand.vmem [shape: f32[1,128], index: 6, kind: input, shape index: {}]
  %s7 = inlined_call_operand.hbm [shape: bf16[16,128], index: 7, kind: output, shape index: {}]
  %s8 = sld [smem:[#allocation0]]
  $region54: #{tpu_custom_call.1} parent=0
    _
  %s10 = ssub.s32 1, %s8
  %s11 = scalar_select 0, %s10, %s8
  $region1: #{tpu_custom_call.1} parent=0
    #allocation2 [shape = 'u8[8192]{0}', space=vmem, size = 0x2000, scoped, tag = 'input window, operand 0, single buffered']
    #allocation3 [shape = 's32[1]{0}', space=sflag, size = 0x4, scoped, tag = 'scoped memory for tpu_custom_call.1']
    #allocation4 [shape = 's32[1]{0}', space=sflag, size = 0x4, scoped, tag = 'scoped memory for tpu_custom_call.1']
    #allocation5 [shape = 'u8[32768]{0}', space=vmem, size = 0x8000, scoped, tag = 'input window, operand 1, single buffered']
    #allocation6 [shape = 's32[1]{0}', space=sflag, size = 0x4, scoped, tag = 'scoped memory for tpu_custom_call.1']
    #allocation7 [shape = 'u8[32768]{0}', space=vmem, size = 0x8000, scoped, tag = 'input window, operand 3, single buffered']
    #allocation8 [shape = 'u8[32768]{0}', space=vmem, size = 0x8000, scoped, tag = 'input window, operand 5, single buffered']
    #allocation9 [shape = 's32[1]{0}', space=sflag, size = 0x4, scoped, tag = 'scoped memory for tpu_custom_call.1']
    #allocation10 [shape = 'u8[4096]{0}', space=vmem, size = 0x1000, scoped, tag = 'output window, operand 0, single buffered']
    %12 = vsyncpa [#allocation3], 0
    %13 = vsyncpa [#allocation6], 0
    %14 = vsyncpa [#allocation9], 0
    %15 = vsyncpa [#allocation4], 0
    // Predicated region
    $region2: #{tpu_custom_call.1} parent=1 // pred_check
      _
    $region3: #{tpu_custom_call.1} parent=1 // pred_check_branch
      %17 = sbr.rel (0) target = $region5
    $region4: #{tpu_custom_call.1} parent=1 // pred_region
      %19 = vsyncadd [#allocation3], 0
      %s20 = sshll.u32 %s0, 4
      %s21 = int_to_ptr.hbm [resolvable:$true] %s20
      %s22 = sshll.u32 [#allocation2], 4
      %s23 = int_to_ptr.vmem [resolvable:$true] %s22
      %28 = dma.hbm_to_vmem [thread:$0]  %s21, 256, %s23, [#allocation3], 128, 128, 8
    $region5: #{tpu_custom_call.1} parent=1 // pred_fallthru
      _
    // Predicated region
    $region6: #{tpu_custom_call.1} parent=1 // pred_check
      _
    $region7: #{tpu_custom_call.1} parent=1 // pred_check_branch
      %30 = sbr.rel (0) target = $region9
    $region8: #{tpu_custom_call.1} parent=1 // pred_region
      %32 = vsyncadd [#allocation6], 0
      %s33 = sshll.u32 %s1, 4
      %s34 = int_to_ptr.hbm [resolvable:$true] %s33
      %s35 = sshll.u32 [#allocation5], 4
      %s36 = int_to_ptr.vmem [resolvable:$true] %s35
      %41 = dma.hbm_to_vmem [thread:$0]  %s34, 1024, %s36, [#allocation6], 64, 64, 4
    $region9: #{tpu_custom_call.1} parent=1 // pred_fallthru
      _
    // Predicated region
    $region10: #{tpu_custom_call.1} parent=1 // pred_check
      _
    $region11: #{tpu_custom_call.1} parent=1 // pred_check_branch
      %43 = sbr.rel (0) target = $region13
    $region12: #{tpu_custom_call.1} parent=1 // pred_region
      _
    $region13: #{tpu_custom_call.1} parent=1 // pred_fallthru
      _
    // Predicated region
    $region14: #{tpu_custom_call.1} parent=1 // pred_check
      _
    $region15: #{tpu_custom_call.1} parent=1 // pred_check_branch
      %45 = sbr.rel (0) target = $region17
    $region16: #{tpu_custom_call.1} parent=1 // pred_region
      %47 = vsyncadd [#allocation6], 0
      %s48 = sshll.u32 %s3, 4
      %s49 = int_to_ptr.hbm [resolvable:$true] %s48
      %s50 = sshll.u32 [#allocation7], 4
      %s51 = int_to_ptr.vmem [resolvable:$true] %s50
      %56 = dma.hbm_to_vmem [thread:$0]  %s49, 1024, %s51, [#allocation6], 64, 64, 4
    $region17: #{tpu_custom_call.1} parent=1 // pred_fallthru
      _
    // Predicated region
    $region18: #{tpu_custom_call.1} parent=1 // pred_check
      _
    $region19: #{tpu_custom_call.1} parent=1 // pred_check_branch
      %58 = sbr.rel (0) target = $region21
    $region20: #{tpu_custom_call.1} parent=1 // pred_region
      _
    $region21: #{tpu_custom_call.1} parent=1 // pred_fallthru
      _
    // Predicated region
    $region22: #{tpu_custom_call.1} parent=1 // pred_check
      _
    $region23: #{tpu_custom_call.1} parent=1 // pred_check_branch
      %60 = sbr.rel (0) target = $region25
    $region24: #{tpu_custom_call.1} parent=1 // pred_region
      %62 = vsyncadd [#allocation9], 0
      %s63 = sshll.u32 %s5, 4
      %s64 = int_to_ptr.hbm [resolvable:$true] %s63
      %s65 = sshll.u32 [#allocation8], 4
      %s66 = int_to_ptr.vmem [resolvable:$true] %s65
      %71 = dma.hbm_to_vmem [thread:$0]  %s64, 1024, %s66, [#allocation9], 64, 64, 4
    $region25: #{tpu_custom_call.1} parent=1 // pred_fallthru
      _
    // Predicated region
    $region26: #{tpu_custom_call.1} parent=1 // pred_check
      _
    $region27: #{tpu_custom_call.1} parent=1 // pred_check_branch
      %73 = sbr.rel (0) target = $region29
    $region28: #{tpu_custom_call.1} parent=1 // pred_region
      _
    $region29: #{tpu_custom_call.1} parent=1 // pred_fallthru
      _
    // Predicated region
    $region30: #{tpu_custom_call.1} parent=1 // pred_check
      _
    $region31: #{tpu_custom_call.1} parent=1 // pred_check_branch
      %75 = sbr.rel (0) target = $region33
    $region32: #{tpu_custom_call.1} parent=1 // pred_region
      %77 = dma.done [#allocation3], 256
    $region33: #{tpu_custom_call.1} parent=1 // pred_fallthru
      _
    // Predicated region
    $region34: #{tpu_custom_call.1} parent=1 // pred_check
      _
    $region35: #{tpu_custom_call.1} parent=1 // pred_check_branch
      %79 = sbr.rel (0) target = $region37
    $region36: #{tpu_custom_call.1} parent=1 // pred_region
      %81 = dma.done [#allocation6], 1024
    $region37: #{tpu_custom_call.1} parent=1 // pred_fallthru
      _
    // Predicated region
    $region38: #{tpu_custom_call.1} parent=1 // pred_check
      _
    $region39: #{tpu_custom_call.1} parent=1 // pred_check_branch
      %83 = sbr.rel (0) target = $region41
    $region40: #{tpu_custom_call.1} parent=1 // pred_region
      %85 = dma.done [#allocation6], 1024
    $region41: #{tpu_custom_call.1} parent=1 // pred_fallthru
      _
    // Predicated region
    $region42: #{tpu_custom_call.1} parent=1 // pred_check
      _
    $region43: #{tpu_custom_call.1} parent=1 // pred_check_branch
      %87 = sbr.rel (0) target = $region45
    $region44: #{tpu_custom_call.1} parent=1 // pred_region
      %89 = dma.done [#allocation9], 1024
    $region45: #{tpu_custom_call.1} parent=1 // pred_fallthru
      _
    %v90 = vld [vmem:[#allocation2] sm:$0xff]
    %v91 = vld [vmem:[#allocation2 + $0x8] sm:$0xff]
    %v92 = vpack.c.bf16 %v91, %v90
    %v93 = vld [vmem:[#allocation5] sm:$0xf]
    %v94 = vld [vmem:[#allocation5 + $0x4] sm:$0xf]
    %v95 = vld [vmem:[#allocation5 + $0x8] sm:$0xf]
    %v96 = vld [vmem:[#allocation5 + $0xc] sm:$0xf]
    %v97 = vld [vmem:[#allocation5 + $0x10] sm:$0xf]
    %v98 = vld [vmem:[#allocation5 + $0x14] sm:$0xf]
    %v99 = vld [vmem:[#allocation5 + $0x18] sm:$0xf]
    %v100 = vld [vmem:[#allocation5 + $0x1c] sm:$0xf]
    %v101 = vld [vmem:[#allocation5 + $0x20] sm:$0xf]
    %v102 = vld [vmem:[#allocation5 + $0x24] sm:$0xf]
    %v103 = vld [vmem:[#allocation5 + $0x28] sm:$0xf]
    %v104 = vld [vmem:[#allocation5 + $0x2c] sm:$0xf]
    %v105 = vld [vmem:[#allocation5 + $0x30] sm:$0xf]
    %v106 = vld [vmem:[#allocation5 + $0x34] sm:$0xf]
    %v107 = vld [vmem:[#allocation5 + $0x38] sm:$0xf]
    %v108 = vld [vmem:[#allocation5 + $0x3c] sm:$0xf]
    %v109 = vld [vmem:[%s2] sm:$0x1]
    %v111 = vperm.slane %v109, 0
    %v129 = vunpack.c.l.b16 %v93
    %v130 = vunpack.c.l.b16 %v94
    %v131 = vunpack.c.l.b16 %v95
    %v132 = vunpack.c.l.b16 %v96
    %v133 = vunpack.c.l.b16 %v97
    %v134 = vunpack.c.l.b16 %v98
    %v135 = vunpack.c.l.b16 %v99
    %v136 = vunpack.c.l.b16 %v100
    %v137 = vunpack.c.l.b16 %v101
    %v138 = vunpack.c.l.b16 %v102
    %v139 = vunpack.c.l.b16 %v103
    %v140 = vunpack.c.l.b16 %v104
    %v141 = vunpack.c.l.b16 %v105
    %v142 = vunpack.c.l.b16 %v106
    %v143 = vunpack.c.l.b16 %v107
    %v144 = vunpack.c.l.b16 %v108
    %v145 = vpack.c.b16 %v130, %v129
    %v146 = vpack.c.b16 %v132, %v131
    %v147 = vpack.c.b16 %v134, %v133
    %v148 = vpack.c.b16 %v136, %v135
    %v149 = vpack.c.b16 %v138, %v137
    %v150 = vpack.c.b16 %v140, %v139
    %v151 = vpack.c.b16 %v142, %v141
    %v152 = vpack.c.b16 %v144, %v143
    %161 = vmatpush.bf16.msra.mxu0 %v152
    %162 = vmatpush.bf16.msra.mxu0 %v151
    %163 = vmatpush.bf16.msra.mxu0 %v150
    %164 = vmatpush.bf16.msra.mxu0 %v149
    %165 = vmatpush.bf16.msra.mxu0 %v148
    %166 = vmatpush.bf16.msra.mxu0 %v147
    %167 = vmatpush.bf16.msra.mxu0 %v146
    %168 = vmatpush.bf16.msra.mxu0 %v145
    %169 = vmatmul.bf16.gmra.mxu0 %v92
    %v170 = vpop.f32.mrf.mxu0
    %v171 = vadd.f32 %v111, %v170
    %v172 = vpop.f32.mrf.mxu0
    %v173 = vadd.f32 %v111, %v172
    %174 = vdwg.mxu0
    %vm175 = vcmp.gt.f32.partialorder %v171, 0.0
    %vm176 = vcmp.gt.f32.partialorder %v173, 0.0
    %v177 = vmul.f32 %v171, 0.01
    %v178 = vmul.f32 %v173, 0.01
    %v179 = vsel %vm175, %v171, %v177
    %v180 = vsel %vm176, %v173, %v178
    %v181 = vpack.c.bf16 %v180, %v179
    %v182 = vld [vmem:[#allocation7] sm:$0xf]
    %v183 = vld [vmem:[#allocation7 + $0x4] sm:$0xf]
    %v184 = vld [vmem:[#allocation7 + $0x8] sm:$0xf]
    %v185 = vld [vmem:[#allocation7 + $0xc] sm:$0xf]
    %v186 = vld [vmem:[#allocation7 + $0x10] sm:$0xf]
    %v187 = vld [vmem:[#allocation7 + $0x14] sm:$0xf]
    %v188 = vld [vmem:[#allocation7 + $0x18] sm:$0xf]
    %v189 = vld [vmem:[#allocation7 + $0x1c] sm:$0xf]
    %v190 = vld [vmem:[#allocation7 + $0x20] sm:$0xf]
    %v191 = vld [vmem:[#allocation7 + $0x24] sm:$0xf]
    %v192 = vld [vmem:[#allocation7 + $0x28] sm:$0xf]
    %v193 = vld [vmem:[#allocation7 + $0x2c] sm:$0xf]
    %v194 = vld [vmem:[#allocation7 + $0x30] sm:$0xf]
    %v195 = vld [vmem:[#allocation7 + $0x34] sm:$0xf]
    %v196 = vld [vmem:[#allocation7 + $0x38] sm:$0xf]
    %v197 = vld [vmem:[#allocation7 + $0x3c] sm:$0xf]
    %v198 = vld [vmem:[%s4] sm:$0x1]
    %v200 = vperm.slane %v198, 0
    %v218 = vunpack.c.l.b16 %v182
    %v219 = vunpack.c.l.b16 %v183
    %v220 = vunpack.c.l.b16 %v184
    %v221 = vunpack.c.l.b16 %v185
    %v222 = vunpack.c.l.b16 %v186
    %v223 = vunpack.c.l.b16 %v187
    %v224 = vunpack.c.l.b16 %v188
    %v225 = vunpack.c.l.b16 %v189
    %v226 = vunpack.c.l.b16 %v190
    %v227 = vunpack.c.l.b16 %v191
    %v228 = vunpack.c.l.b16 %v192
    %v229 = vunpack.c.l.b16 %v193
    %v230 = vunpack.c.l.b16 %v194
    %v231 = vunpack.c.l.b16 %v195
    %v232 = vunpack.c.l.b16 %v196
    %v233 = vunpack.c.l.b16 %v197
    %v234 = vpack.c.b16 %v219, %v218
    %v235 = vpack.c.b16 %v221, %v220
    %v236 = vpack.c.b16 %v223, %v222
    %v237 = vpack.c.b16 %v225, %v224
    %v238 = vpack.c.b16 %v227, %v226
    %v239 = vpack.c.b16 %v229, %v228
    %v240 = vpack.c.b16 %v231, %v230
    %v241 = vpack.c.b16 %v233, %v232
    %250 = vmatpush.bf16.msra.mxu0 %v241
    %251 = vmatpush.bf16.msra.mxu0 %v240
    %252 = vmatpush.bf16.msra.mxu0 %v239
    %253 = vmatpush.bf16.msra.mxu0 %v238
    %254 = vmatpush.bf16.msra.mxu0 %v237
    %255 = vmatpush.bf16.msra.mxu0 %v236
    %256 = vmatpush.bf16.msra.mxu0 %v235
    %257 = vmatpush.bf16.msra.mxu0 %v234
    %258 = vmatmul.bf16.gmra.mxu0 %v181
    %v259 = vpop.f32.mrf.mxu0
    %v260 = vadd.f32 %v200, %v259
    %v261 = vpop.f32.mrf.mxu0
    %v262 = vadd.f32 %v200, %v261
    %263 = vdwg.mxu0
    %vm264 = vcmp.gt.f32.partialorder %v260, 0.0
    %vm265 = vcmp.gt.f32.partialorder %v262, 0.0
    %v266 = vmul.f32 %v260, 0.01
    %v267 = vmul.f32 %v262, 0.01
    %v268 = vsel %vm264, %v260, %v266
    %v269 = vsel %vm265, %v262, %v267
    %v270 = vpack.c.bf16 %v269, %v268
    %v271 = vld [vmem:[#allocation8] sm:$0xf]
    %v272 = vld [vmem:[#allocation8 + $0x4] sm:$0xf]
    %v273 = vld [vmem:[#allocation8 + $0x8] sm:$0xf]
    %v274 = vld [vmem:[#allocation8 + $0xc] sm:$0xf]
    %v275 = vld [vmem:[#allocation8 + $0x10] sm:$0xf]
    %v276 = vld [vmem:[#allocation8 + $0x14] sm:$0xf]
    %v277 = vld [vmem:[#allocation8 + $0x18] sm:$0xf]
    %v278 = vld [vmem:[#allocation8 + $0x1c] sm:$0xf]
    %v279 = vld [vmem:[#allocation8 + $0x20] sm:$0xf]
    %v280 = vld [vmem:[#allocation8 + $0x24] sm:$0xf]
    %v281 = vld [vmem:[#allocation8 + $0x28] sm:$0xf]
    %v282 = vld [vmem:[#allocation8 + $0x2c] sm:$0xf]
    %v283 = vld [vmem:[#allocation8 + $0x30] sm:$0xf]
    %v284 = vld [vmem:[#allocation8 + $0x34] sm:$0xf]
    %v285 = vld [vmem:[#allocation8 + $0x38] sm:$0xf]
    %v286 = vld [vmem:[#allocation8 + $0x3c] sm:$0xf]
    %v287 = vld [vmem:[%s6] sm:$0x1]
    %v289 = vperm.slane %v287, 0
    %v307 = vunpack.c.l.b16 %v271
    %v308 = vunpack.c.l.b16 %v272
    %v309 = vunpack.c.l.b16 %v273
    %v310 = vunpack.c.l.b16 %v274
    %v311 = vunpack.c.l.b16 %v275
    %v312 = vunpack.c.l.b16 %v276
    %v313 = vunpack.c.l.b16 %v277
    %v314 = vunpack.c.l.b16 %v278
    %v315 = vunpack.c.l.b16 %v279
    %v316 = vunpack.c.l.b16 %v280
    %v317 = vunpack.c.l.b16 %v281
    %v318 = vunpack.c.l.b16 %v282
    %v319 = vunpack.c.l.b16 %v283
    %v320 = vunpack.c.l.b16 %v284
    %v321 = vunpack.c.l.b16 %v285
    %v322 = vunpack.c.l.b16 %v286
    %v323 = vpack.c.b16 %v308, %v307
    %v324 = vpack.c.b16 %v310, %v309
    %v325 = vpack.c.b16 %v312, %v311
    %v326 = vpack.c.b16 %v314, %v313
    %v327 = vpack.c.b16 %v316, %v315
    %v328 = vpack.c.b16 %v318, %v317
    %v329 = vpack.c.b16 %v320, %v319
    %v330 = vpack.c.b16 %v322, %v321
    %339 = vmatpush.bf16.msra.mxu0 %v330
    %340 = vmatpush.bf16.msra.mxu0 %v329
    %341 = vmatpush.bf16.msra.mxu0 %v328
    %342 = vmatpush.bf16.msra.mxu0 %v327
    %343 = vmatpush.bf16.msra.mxu0 %v326
    %344 = vmatpush.bf16.msra.mxu0 %v325
    %345 = vmatpush.bf16.msra.mxu0 %v324
    %346 = vmatpush.bf16.msra.mxu0 %v323
    %347 = vmatmul.bf16.gmra.mxu0 %v270
    %v348 = vpop.f32.mrf.mxu0
    %v349 = vadd.f32 %v289, %v348
    %v350 = vpop.f32.mrf.mxu0
    %v351 = vadd.f32 %v289, %v350
    %352 = vdwg.mxu0
    %v353 = vpack.c.bf16 %v349, %v349
    %v354 = vpack.c.bf16 %v351, %v351
    %355 = vst [vmem:[#allocation10] sm:$0xf] %v353
    %356 = vst [vmem:[#allocation10 + $0x4] sm:$0xf] %v354
    // Predicated region
    $region46: #{tpu_custom_call.1} parent=1 // pred_check
      _
    $region47: #{tpu_custom_call.1} parent=1 // pred_check_branch
      %358 = sbr.rel (0) target = $region49
    $region48: #{tpu_custom_call.1} parent=1 // pred_region
      %360 = vsyncadd [#allocation4], 0
      %s361 = sshll.u32 [#allocation10], 4
      %s362 = int_to_ptr.vmem [resolvable:$true] %s361
      %s363 = sshll.u32 %s7, 4
      %s364 = int_to_ptr.hbm [resolvable:$true] %s363
      %369 = dma.vmem_to_hbm [thread:$0]  %s362, 128, %s364, [#allocation4], 64, 64, 4
    $region49: #{tpu_custom_call.1} parent=1 // pred_fallthru
      _
    // Predicated region
    $region50: #{tpu_custom_call.1} parent=1 // pred_check
      _
    $region51: #{tpu_custom_call.1} parent=1 // pred_check_branch
      %371 = sbr.rel (0) target = $region53
    $region52: #{tpu_custom_call.1} parent=1 // pred_region
      %373 = dma.done [#allocation4], 128
    $region53: #{tpu_custom_call.1} parent=1 // pred_fallthru
      _
    %374 = vsyncpa [#allocation3], 1
    %375 = vsyncpa [#allocation6], 1
    %376 = vsyncpa [#allocation9], 1
    %377 = vsyncpa [#allocation4], 1

// kernel: tpu_custom_call.1
$region0: #{tpu_custom_call.1}
  #allocation0 [shape = 'u32[]', space=smem, size = 0x4, offset = 0x4, fixed_abs, tag = 'smem constant byte address 0x4 - core index']
  #allocation1 [shape = 'u32[72,128]{1,0:T(1,128)}', space=vmem, size = 0x9000, scoped, tag = 'internal scratch']
  %s0 = inlined_call_operand.hbm [shape: f32[16,128], index: 0, kind: input, shape index: {}]
  %s1 = inlined_call_operand.hbm [shape: bf16[128,128], index: 1, kind: input, shape index: {}]
  %s2 = inlined_call_operand.vmem [shape: f32[1,128], index: 2, kind: input, shape index: {}]
  %s3 = inlined_call_operand.hbm [shape: bf16[128,128], index: 3, kind: input, shape index: {}]
  %s4 = inlined_call_operand.vmem [shape: f32[1,128], index: 4, kind: input, shape index: {}]
  %s5 = inlined_call_operand.hbm [shape: bf16[128,128], index: 5, kind: input, shape index: {}]
  %s6 = inlined_call_operand.vmem [shape: f32[1,128], index: 6, kind: input, shape index: {}]
  %s7 = inlined_call_operand.hbm [shape: bf16[16,128], index: 7, kind: output, shape index: {}]
  %s8 = sld [smem:[#allocation0]]
  $region54: #{tpu_custom_call.1} parent=0
    _
  %s10 = ssub.s32 1, %s8
  %s11 = scalar_select 0, %s10, %s8
  $region1: #{tpu_custom_call.1} parent=0
    #allocation2 [shape = 'u8[8192]{0}', space=vmem, size = 0x2000, scoped, tag = 'input window, operand 0, single buffered']
    #allocation3 [shape = 's32[1]{0}', space=sflag, size = 0x4, scoped, tag = 'scoped memory for tpu_custom_call.1']
    #allocation4 [shape = 's32[1]{0}', space=sflag, size = 0x4, scoped, tag = 'scoped memory for tpu_custom_call.1']
    #allocation5 [shape = 'u8[32768]{0}', space=vmem, size = 0x8000, scoped, tag = 'input window, operand 1, single buffered']
    #allocation6 [shape = 's32[1]{0}', space=sflag, size = 0x4, scoped, tag = 'scoped memory for tpu_custom_call.1']
    #allocation7 [shape = 'u8[32768]{0}', space=vmem, size = 0x8000, scoped, tag = 'input window, operand 3, single buffered']
    #allocation8 [shape = 'u8[32768]{0}', space=vmem, size = 0x8000, scoped, tag = 'input window, operand 5, single buffered']
    #allocation9 [shape = 's32[1]{0}', space=sflag, size = 0x4, scoped, tag = 'scoped memory for tpu_custom_call.1']
    #allocation10 [shape = 'u8[4096]{0}', space=vmem, size = 0x1000, scoped, tag = 'output window, operand 0, single buffered']
    %12 = vsyncpa [#allocation3], 0
    %13 = vsyncpa [#allocation6], 0
    %14 = vsyncpa [#allocation9], 0
    %15 = vsyncpa [#allocation4], 0
    // Predicated region
    $region2: #{tpu_custom_call.1} parent=1 // pred_check
      _
    $region3: #{tpu_custom_call.1} parent=1 // pred_check_branch
      %17 = sbr.rel (0) target = $region5
    $region4: #{tpu_custom_call.1} parent=1 // pred_region
      %19 = vsyncadd [#allocation3], 0
      %s20 = sshll.u32 %s0, 4
      %s21 = int_to_ptr.hbm [resolvable:$true] %s20
      %s22 = sshll.u32 [#allocation2], 4
      %s23 = int_to_ptr.vmem [resolvable:$true] %s22
      %28 = dma.hbm_to_vmem [thread:$0]  %s21, 256, %s23, [#allocation3], 128, 128, 8
    $region5: #{tpu_custom_call.1} parent=1 // pred_fallthru
      _
    // Predicated region
    $region6: #{tpu_custom_call.1} parent=1 // pred_check
      _
    $region7: #{tpu_custom_call.1} parent=1 // pred_check_branch
      %30 = sbr.rel (0) target = $region9
    $region8: #{tpu_custom_call.1} parent=1 // pred_region
      %32 = vsyncadd [#allocation6], 0
      %s33 = sshll.u32 %s1, 4
      %s34 = int_to_ptr.hbm [resolvable:$true] %s33
      %s35 = sshll.u32 [#allocation5], 4
      %s36 = int_to_ptr.vmem [resolvable:$true] %s35
      %41 = dma.hbm_to_vmem [thread:$0]  %s34, 1024, %s36, [#allocation6], 64, 64, 4
    $region9: #{tpu_custom_call.1} parent=1 // pred_fallthru
      _
    // Predicated region
    $region10: #{tpu_custom_call.1} parent=1 // pred_check
      _
    $region11: #{tpu_custom_call.1} parent=1 // pred_check_branch
      %43 = sbr.rel (0) target = $region13
    $region12: #{tpu_custom_call.1} parent=1 // pred_region
      _
    $region13: #{tpu_custom_call.1} parent=1 // pred_fallthru
      _
    // Predicated region
    $region14: #{tpu_custom_call.1} parent=1 // pred_check
      _
    $region15: #{tpu_custom_call.1} parent=1 // pred_check_branch
      %45 = sbr.rel (0) target = $region17
    $region16: #{tpu_custom_call.1} parent=1 // pred_region
      %47 = vsyncadd [#allocation6], 0
      %s48 = sshll.u32 %s3, 4
      %s49 = int_to_ptr.hbm [resolvable:$true] %s48
      %s50 = sshll.u32 [#allocation7], 4
      %s51 = int_to_ptr.vmem [resolvable:$true] %s50
      %56 = dma.hbm_to_vmem [thread:$0]  %s49, 1024, %s51, [#allocation6], 64, 64, 4
    $region17: #{tpu_custom_call.1} parent=1 // pred_fallthru
      _
    // Predicated region
    $region18: #{tpu_custom_call.1} parent=1 // pred_check
      _
    $region19: #{tpu_custom_call.1} parent=1 // pred_check_branch
      %58 = sbr.rel (0) target = $region21
    $region20: #{tpu_custom_call.1} parent=1 // pred_region
      _
    $region21: #{tpu_custom_call.1} parent=1 // pred_fallthru
      _
    // Predicated region
    $region22: #{tpu_custom_call.1} parent=1 // pred_check
      _
    $region23: #{tpu_custom_call.1} parent=1 // pred_check_branch
      %60 = sbr.rel (0) target = $region25
    $region24: #{tpu_custom_call.1} parent=1 // pred_region
      %62 = vsyncadd [#allocation9], 0
      %s63 = sshll.u32 %s5, 4
      %s64 = int_to_ptr.hbm [resolvable:$true] %s63
      %s65 = sshll.u32 [#allocation8], 4
      %s66 = int_to_ptr.vmem [resolvable:$true] %s65
      %71 = dma.hbm_to_vmem [thread:$0]  %s64, 1024, %s66, [#allocation9], 64, 64, 4
    $region25: #{tpu_custom_call.1} parent=1 // pred_fallthru
      _
    // Predicated region
    $region26: #{tpu_custom_call.1} parent=1 // pred_check
      _
    $region27: #{tpu_custom_call.1} parent=1 // pred_check_branch
      %73 = sbr.rel (0) target = $region29
    $region28: #{tpu_custom_call.1} parent=1 // pred_region
      _
    $region29: #{tpu_custom_call.1} parent=1 // pred_fallthru
      _
    // Predicated region
    $region30: #{tpu_custom_call.1} parent=1 // pred_check
      _
    $region31: #{tpu_custom_call.1} parent=1 // pred_check_branch
      %75 = sbr.rel (0) target = $region33
    $region32: #{tpu_custom_call.1} parent=1 // pred_region
      %77 = dma.done [#allocation3], 256
    $region33: #{tpu_custom_call.1} parent=1 // pred_fallthru
      _
    // Predicated region
    $region34: #{tpu_custom_call.1} parent=1 // pred_check
      _
    $region35: #{tpu_custom_call.1} parent=1 // pred_check_branch
      %79 = sbr.rel (0) target = $region37
    $region36: #{tpu_custom_call.1} parent=1 // pred_region
      %81 = dma.done [#allocation6], 1024
    $region37: #{tpu_custom_call.1} parent=1 // pred_fallthru
      _
    // Predicated region
    $region38: #{tpu_custom_call.1} parent=1 // pred_check
      _
    $region39: #{tpu_custom_call.1} parent=1 // pred_check_branch
      %83 = sbr.rel (0) target = $region41
    $region40: #{tpu_custom_call.1} parent=1 // pred_region
      %85 = dma.done [#allocation6], 1024
    $region41: #{tpu_custom_call.1} parent=1 // pred_fallthru
      _
    // Predicated region
    $region42: #{tpu_custom_call.1} parent=1 // pred_check
      _
    $region43: #{tpu_custom_call.1} parent=1 // pred_check_branch
      %87 = sbr.rel (0) target = $region45
    $region44: #{tpu_custom_call.1} parent=1 // pred_region
      %89 = dma.done [#allocation9], 1024
    $region45: #{tpu_custom_call.1} parent=1 // pred_fallthru
      _
    %v90 = vld [vmem:[#allocation2] sm:$0xff]
    %v91 = vld [vmem:[#allocation2 + $0x8] sm:$0xff]
    %v92 = vpack.c.bf16 %v91, %v90
    %v93 = vld [vmem:[#allocation5] sm:$0xf]
    %v94 = vld [vmem:[#allocation5 + $0x4] sm:$0xf]
    %v95 = vld [vmem:[#allocation5 + $0x8] sm:$0xf]
    %v96 = vld [vmem:[#allocation5 + $0xc] sm:$0xf]
    %v97 = vld [vmem:[#allocation5 + $0x10] sm:$0xf]
    %v98 = vld [vmem:[#allocation5 + $0x14] sm:$0xf]
    %v99 = vld [vmem:[#allocation5 + $0x18] sm:$0xf]
    %v100 = vld [vmem:[#allocation5 + $0x1c] sm:$0xf]
    %v101 = vld [vmem:[#allocation5 + $0x20] sm:$0xf]
    %v102 = vld [vmem:[#allocation5 + $0x24] sm:$0xf]
    %v103 = vld [vmem:[#allocation5 + $0x28] sm:$0xf]
    %v104 = vld [vmem:[#allocation5 + $0x2c] sm:$0xf]
    %v105 = vld [vmem:[#allocation5 + $0x30] sm:$0xf]
    %v106 = vld [vmem:[#allocation5 + $0x34] sm:$0xf]
    %v107 = vld [vmem:[#allocation5 + $0x38] sm:$0xf]
    %v108 = vld [vmem:[#allocation5 + $0x3c] sm:$0xf]
    %v109 = vld [vmem:[%s2] sm:$0x1]
    %v111 = vperm.slane %v109, 0
    %v129 = vunpack.c.l.b16 %v93
    %v130 = vunpack.c.l.b16 %v94
    %v131 = vunpack.c.l.b16 %v95
    %v132 = vunpack.c.l.b16 %v96
    %v133 = vunpack.c.l.b16 %v97
    %v134 = vunpack.c.l.b16 %v98
    %v135 = vunpack.c.l.b16 %v99
    %v136 = vunpack.c.l.b16 %v100
    %v137 = vunpack.c.l.b16 %v101
    %v138 = vunpack.c.l.b16 %v102
    %v139 = vunpack.c.l.b16 %v103
    %v140 = vunpack.c.l.b16 %v104
    %v141 = vunpack.c.l.b16 %v105
    %v142 = vunpack.c.l.b16 %v106
    %v143 = vunpack.c.l.b16 %v107
    %v144 = vunpack.c.l.b16 %v108
    %v145 = vpack.c.b16 %v130, %v129
    %v146 = vpack.c.b16 %v132, %v131
    %v147 = vpack.c.b16 %v134, %v133
    %v148 = vpack.c.b16 %v136, %v135
    %v149 = vpack.c.b16 %v138, %v137
    %v150 = vpack.c.b16 %v140, %v139
    %v151 = vpack.c.b16 %v142, %v141
    %v152 = vpack.c.b16 %v144, %v143
    %161 = vmatpush.bf16.msra.mxu0 %v152
    %162 = vmatpush.bf16.msra.mxu0 %v151
    %163 = vmatpush.bf16.msra.mxu0 %v150
    %164 = vmatpush.bf16.msra.mxu0 %v149
    %165 = vmatpush.bf16.msra.mxu0 %v148
    %166 = vmatpush.bf16.msra.mxu0 %v147
    %167 = vmatpush.bf16.msra.mxu0 %v146
    %168 = vmatpush.bf16.msra.mxu0 %v145
    %169 = vmatmul.bf16.gmra.mxu0 %v92
    %v170 = vpop.f32.mrf.mxu0
    %v171 = vadd.f32 %v111, %v170
    %v172 = vpop.f32.mrf.mxu0
    %v173 = vadd.f32 %v111, %v172
    %174 = vdwg.mxu0
    %vm175 = vcmp.gt.f32.partialorder %v171, 0.0
    %vm176 = vcmp.gt.f32.partialorder %v173, 0.0
    %v177 = vmul.f32 %v171, 0.01
    %v178 = vmul.f32 %v173, 0.01
    %v179 = vsel %vm175, %v171, %v177
    %v180 = vsel %vm176, %v173, %v178
    %v181 = vpack.c.bf16 %v180, %v179
    %v182 = vld [vmem:[#allocation7] sm:$0xf]
    %v183 = vld [vmem:[#allocation7 + $0x4] sm:$0xf]
    %v184 = vld [vmem:[#allocation7 + $0x8] sm:$0xf]
    %v185 = vld [vmem:[#allocation7 + $0xc] sm:$0xf]
    %v186 = vld [vmem:[#allocation7 + $0x10] sm:$0xf]
    %v187 = vld [vmem:[#allocation7 + $0x14] sm:$0xf]
    %v188 = vld [vmem:[#allocation7 + $0x18] sm:$0xf]
    %v189 = vld [vmem:[#allocation7 + $0x1c] sm:$0xf]
    %v190 = vld [vmem:[#allocation7 + $0x20] sm:$0xf]
    %v191 = vld [vmem:[#allocation7 + $0x24] sm:$0xf]
    %v192 = vld [vmem:[#allocation7 + $0x28] sm:$0xf]
    %v193 = vld [vmem:[#allocation7 + $0x2c] sm:$0xf]
    %v194 = vld [vmem:[#allocation7 + $0x30] sm:$0xf]
    %v195 = vld [vmem:[#allocation7 + $0x34] sm:$0xf]
    %v196 = vld [vmem:[#allocation7 + $0x38] sm:$0xf]
    %v197 = vld [vmem:[#allocation7 + $0x3c] sm:$0xf]
    %v198 = vld [vmem:[%s4] sm:$0x1]
    %v200 = vperm.slane %v198, 0
    %v218 = vunpack.c.l.b16 %v182
    %v219 = vunpack.c.l.b16 %v183
    %v220 = vunpack.c.l.b16 %v184
    %v221 = vunpack.c.l.b16 %v185
    %v222 = vunpack.c.l.b16 %v186
    %v223 = vunpack.c.l.b16 %v187
    %v224 = vunpack.c.l.b16 %v188
    %v225 = vunpack.c.l.b16 %v189
    %v226 = vunpack.c.l.b16 %v190
    %v227 = vunpack.c.l.b16 %v191
    %v228 = vunpack.c.l.b16 %v192
    %v229 = vunpack.c.l.b16 %v193
    %v230 = vunpack.c.l.b16 %v194
    %v231 = vunpack.c.l.b16 %v195
    %v232 = vunpack.c.l.b16 %v196
    %v233 = vunpack.c.l.b16 %v197
    %v234 = vpack.c.b16 %v219, %v218
    %v235 = vpack.c.b16 %v221, %v220
    %v236 = vpack.c.b16 %v223, %v222
    %v237 = vpack.c.b16 %v225, %v224
    %v238 = vpack.c.b16 %v227, %v226
    %v239 = vpack.c.b16 %v229, %v228
    %v240 = vpack.c.b16 %v231, %v230
    %v241 = vpack.c.b16 %v233, %v232
    %250 = vmatpush.bf16.msra.mxu0 %v241
    %251 = vmatpush.bf16.msra.mxu0 %v240
    %252 = vmatpush.bf16.msra.mxu0 %v239
    %253 = vmatpush.bf16.msra.mxu0 %v238
    %254 = vmatpush.bf16.msra.mxu0 %v237
    %255 = vmatpush.bf16.msra.mxu0 %v236
    %256 = vmatpush.bf16.msra.mxu0 %v235
    %257 = vmatpush.bf16.msra.mxu0 %v234
    %258 = vmatmul.bf16.gmra.mxu0 %v181
    %v259 = vpop.f32.mrf.mxu0
    %v260 = vadd.f32 %v200, %v259
    %v261 = vpop.f32.mrf.mxu0
    %v262 = vadd.f32 %v200, %v261
    %263 = vdwg.mxu0
    %vm264 = vcmp.gt.f32.partialorder %v260, 0.0
    %vm265 = vcmp.gt.f32.partialorder %v262, 0.0
    %v266 = vmul.f32 %v260, 0.01
    %v267 = vmul.f32 %v262, 0.01
    %v268 = vsel %vm264, %v260, %v266
    %v269 = vsel %vm265, %v262, %v267
    %v270 = vpack.c.bf16 %v269, %v268
    %v271 = vld [vmem:[#allocation8] sm:$0xf]
    %v272 = vld [vmem:[#allocation8 + $0x4] sm:$0xf]
    %v273 = vld [vmem:[#allocation8 + $0x8] sm:$0xf]
    %v274 = vld [vmem:[#allocation8 + $0xc] sm:$0xf]
    %v275 = vld [vmem:[#allocation8 + $0x10] sm:$0xf]
    %v276 = vld [vmem:[#allocation8 + $0x14] sm:$0xf]
    %v277 = vld [vmem:[#allocation8 + $0x18] sm:$0xf]
    %v278 = vld [vmem:[#allocation8 + $0x1c] sm:$0xf]
    %v279 = vld [vmem:[#allocation8 + $0x20] sm:$0xf]
    %v280 = vld [vmem:[#allocation8 + $0x24] sm:$0xf]
    %v281 = vld [vmem:[#allocation8 + $0x28] sm:$0xf]
    %v282 = vld [vmem:[#allocation8 + $0x2c] sm:$0xf]
    %v283 = vld [vmem:[#allocation8 + $0x30] sm:$0xf]
    %v284 = vld [vmem:[#allocation8 + $0x34] sm:$0xf]
    %v285 = vld [vmem:[#allocation8 + $0x38] sm:$0xf]
    %v286 = vld [vmem:[#allocation8 + $0x3c] sm:$0xf]
    %v287 = vld [vmem:[%s6] sm:$0x1]
    %v289 = vperm.slane %v287, 0
    %v307 = vunpack.c.l.b16 %v271
    %v308 = vunpack.c.l.b16 %v272
    %v309 = vunpack.c.l.b16 %v273
    %v310 = vunpack.c.l.b16 %v274
    %v311 = vunpack.c.l.b16 %v275
    %v312 = vunpack.c.l.b16 %v276
    %v313 = vunpack.c.l.b16 %v277
    %v314 = vunpack.c.l.b16 %v278
    %v315 = vunpack.c.l.b16 %v279
    %v316 = vunpack.c.l.b16 %v280
    %v317 = vunpack.c.l.b16 %v281
    %v318 = vunpack.c.l.b16 %v282
    %v319 = vunpack.c.l.b16 %v283
    %v320 = vunpack.c.l.b16 %v284
    %v321 = vunpack.c.l.b16 %v285
    %v322 = vunpack.c.l.b16 %v286
    %v323 = vpack.c.b16 %v308, %v307
    %v324 = vpack.c.b16 %v310, %v309
    %v325 = vpack.c.b16 %v312, %v311
    %v326 = vpack.c.b16 %v314, %v313
    %v327 = vpack.c.b16 %v316, %v315
    %v328 = vpack.c.b16 %v318, %v317
    %v329 = vpack.c.b16 %v320, %v319
    %v330 = vpack.c.b16 %v322, %v321
    %339 = vmatpush.bf16.msra.mxu0 %v330
    %340 = vmatpush.bf16.msra.mxu0 %v329
    %341 = vmatpush.bf16.msra.mxu0 %v328
    %342 = vmatpush.bf16.msra.mxu0 %v327
    %343 = vmatpush.bf16.msra.mxu0 %v326
    %344 = vmatpush.bf16.msra.mxu0 %v325
    %345 = vmatpush.bf16.msra.mxu0 %v324
    %346 = vmatpush.bf16.msra.mxu0 %v323
    %347 = vmatmul.bf16.gmra.mxu0 %v270
    %v348 = vpop.f32.mrf.mxu0
    %v349 = vadd.f32 %v289, %v348
    %v350 = vpop.f32.mrf.mxu0
    %v351 = vadd.f32 %v289, %v350
    %352 = vdwg.mxu0
    %v353 = vpack.c.bf16 %v349, %v349
    %v354 = vpack.c.bf16 %v351, %v351
    %355 = vst [vmem:[#allocation10] sm:$0xf] %v353
    %356 = vst [vmem:[#allocation10 + $0x4] sm:$0xf] %v354
    // Predicated region
    $region46: #{tpu_custom_call.1} parent=1 // pred_check
      _
    $region47: #{tpu_custom_call.1} parent=1 // pred_check_branch
      %358 = sbr.rel (0) target = $region49
    $region48: #{tpu_custom_call.1} parent=1 // pred_region
      %360 = vsyncadd [#allocation4], 0
      %s361 = sshll.u32 [#allocation10], 4
      %s362 = int_to_ptr.vmem [resolvable:$true] %s361
      %s363 = sshll.u32 %s7, 4
      %s364 = int_to_ptr.hbm [resolvable:$true] %s363
      %369 = dma.vmem_to_hbm [thread:$0]  %s362, 128, %s364, [#allocation4], 64, 64, 4
    $region49: #{tpu_custom_call.1} parent=1 // pred_fallthru
      _
    // Predicated region
    $region50: #{tpu_custom_call.1} parent=1 // pred_check
      _
    $region51: #{tpu_custom_call.1} parent=1 // pred_check_branch
      %371 = sbr.rel (0) target = $region53
    $region52: #{tpu_custom_call.1} parent=1 // pred_region
      %373 = dma.done [#allocation4], 128
    $region53: #{tpu_custom_call.1} parent=1 // pred_fallthru
      _
    %374 = vsyncpa [#allocation3], 1
    %375 = vsyncpa [#allocation6], 1
    %376 = vsyncpa [#allocation9], 1
    %377 = vsyncpa [#allocation4], 1

</llo_original>
